<compile_context>
chip_gen: v5e
topology: v5e:2x2
jax: 0.10.0
libtpu: 0.0.40
codegen_flags: <defaults>
</compile_context>

<pallas_src>
import math
import functools

import jax
import jax.numpy as jnp
from jax.experimental import pallas as pl
from jax.experimental.pallas import tpu as pltpu


def _round_up(a, m):
    return ((a + m - 1) // m) * m


def _conv1d_kernel(x_hbm, w_ref, b_ref, o_ref, xbuf, sem, *,
                   k_taps, dilation, tile_l, c_in, split_kdots):
    """Produce one (tile_co, tile_l) output tile.

    x_hbm : (B, C_in_eff, L_padded) HBM ref (memory_space=ANY)
    w_ref : split path  : (k_taps, tile_co, C_in_eff) VMEM tile
            stacked path: (tile_co, k_taps * C_in_eff) VMEM tile
    b_ref : (tile_co, 1) f32 VMEM tile
    o_ref : (tile_co, tile_l) output tile
    xbuf  : (2, C_in_eff, win) VMEM scratch (double-buffered input window)
    sem   : (2,) DMA semaphores
    """
    bb = pl.program_id(0)
    jj = pl.program_id(2)
    nj = pl.num_programs(2)
    win = xbuf.shape[-1]
    slot = jj % 2

    def issue(block_idx, s):
        start = pl.multiple_of(block_idx * tile_l, 128)
        pltpu.make_async_copy(x_hbm.at[bb, :, pl.ds(start, win)],
                              xbuf.at[s], sem.at[s]).start()

    # Prime the chain for the first L-tile of this (batch, C_out-block) row.
    @pl.when(jj == 0)
    def _prime():
        issue(jj, slot)

    # Wait for the current tile's window (started by the prime above or by the
    # prefetch issued on the previous grid step).
    pltpu.make_async_copy(
        x_hbm.at[bb, :, pl.ds(pl.multiple_of(jj * tile_l, 128), win)],
        xbuf.at[slot], sem.at[slot]).wait()

    # Prefetch the next tile's window into the other slot; overlaps with the
    # MXU work below.
    @pl.when(jj + 1 < nj)
    def _prefetch():
        issue(jj + 1, 1 - slot)

    if split_kdots:
        # Large C_in: K accumulating dots, each with a >=128-wide contraction.
        # No (K*C_in, tile_l) LHS materialization, no per-tap lane extracts on
        # the weight (leading-axis slice of the (K, C_out, C_in) tile).
        acc = jnp.zeros(o_ref.shape, jnp.float32)
        for kk in range(k_taps):
            xk = xbuf[slot, :, kk * dilation: kk * dilation + tile_l]
            acc = acc + jnp.dot(w_ref[kk], xk,
                                preferred_element_type=jnp.float32)
    else:
        # Small C_in: stack the K shifted tap windows so a single MXU dot gets
        # the full K*C_in contraction (the stacked LHS is tiny in this regime).
        parts = [xbuf[slot, :, kk * dilation: kk * dilation + tile_l]
                 for kk in range(k_taps)]
        lhs = parts[0] if k_taps == 1 else jnp.concatenate(parts, axis=0)
        acc = jnp.dot(w_ref[...], lhs, preferred_element_type=jnp.float32)

    # Bias added post-dot in f32: a (tile_co, tile_l) VPU add, free under MXU.
    o_ref[...] = (acc + b_ref[...]).astype(o_ref.dtype)


def conv_norm_forward(x, weight, bias=None, *, stride=1, padding=None, dilation=1,
                      compute_dtype=None, max_tile_l=2048):
    """ConvNorm.forward: nn.Conv1d(x) with PyTorch semantics (NCL layout)."""
    b, c_in, l = x.shape
    c_out, c_in_w, k = weight.shape
    assert c_in == c_in_w
    if padding is None:
        assert k % 2 == 1
        padding = int(dilation * (k - 1) / 2)
    if bias is None:
        bias = jnp.zeros((c_out,), dtype=jnp.float32)

    out_dtype = x.dtype
    cdt = jnp.dtype(compute_dtype) if compute_dtype is not None else jnp.dtype(x.dtype)
    dsize = cdt.itemsize
    out_dsize = jnp.dtype(out_dtype).itemsize

    l_padded = l + 2 * padding
    l_out = (l_padded - dilation * (k - 1) - 1) // stride + 1
    assert l_out > 0

    if stride == 1:
        k_eff, dil_eff, c_in_eff = k, dilation, c_in
    else:
        # Strided conv -> per-tap decimation in the wrapper turns it into a
        # dense 1x1 conv over K*C_in channels (halo 0, no strided kernel loads).
        k_eff, dil_eff, c_in_eff = 1, 1, k * c_in

    halo = (k_eff - 1) * dil_eff
    # Switch to K accumulating dots once a single tap already fills the MXU
    # contraction (128 on v5e; still efficient on the 256-deep v6e/v7x MXU).
    split_kdots = c_in_eff >= 128

    # ---- per-generation VMEM budget & tile-size selection -------------------
    vmem_cap = 64 * 1024 * 1024            # v7x per-core VMEM (smallest target)
    try:
        vmem_cap = int(pltpu.get_tpu_info().vmem_capacity_bytes)
    except Exception:
        pass
    budget = min(int(vmem_cap * 0.6), 96 * 1024 * 1024)

    ci8 = _round_up(c_in_eff, 8)
    co8 = _round_up(c_out, 8)
    if split_kdots:
        w_elems = k_eff * co8 * _round_up(c_in_eff, 128)
    else:
        w_elems = co8 * _round_up(k_eff * c_in_eff, 128)

    def footprint(t):
        win_t = _round_up(t + halo, 128)
        fp = 2 * ci8 * win_t * dsize              # double-buffered input windows
        fp += 2 * w_elems * dsize                 # weight (pipeline double buffer)
        fp += 2 * co8 * 128 * 4                   # bias (lane-padded, f32)
        fp += 2 * co8 * t * out_dsize             # double-buffered output blocks
        fp += co8 * t * 4                         # f32 accumulator
        if split_kdots:
            fp += 2 * ci8 * t * dsize             # per-tap window slices
        else:
            fp += _round_up(k_eff * c_in_eff, 8) * t * dsize   # stacked LHS
        return fp

    mt = max(128, (int(max_tile_l) // 128) * 128)
    tl_cap = min(mt, _round_up(l_out, 128))
    cands = sorted({c for c in (tl_cap, 2048, 1024, 512, 256, 128)
                    if 128 <= c <= tl_cap}, reverse=True)
    tile_l = cands[-1]                     # fallback: smallest (one-vreg-wide) tile
    for cand in cands:
        if footprint(cand) <= budget:
            tile_l = cand
            break

    nj = -(-l_out // tile_l)
    win = _round_up(tile_l + halo, 128)    # lane-dense DMA windows
    needed_len = (nj - 1) * tile_l + win

    # Optional parallel C_out-block axis: keeps both v7x TensorCores busy for
    # batch-1 / single-L-tile calls and halves the per-core weight block.
    n_co = 2 if (b * nj == 1 and c_out >= 256 and c_out % 16 == 0) else 1
    tile_co = c_out // n_co

    # ---- single fused host-side copy: zero-pad (and decimate if strided) ----
    if stride == 1:
        x_eff, left = x, padding
    else:
        x_p = jnp.pad(x, ((0, 0), (0, 0), (padding, padding)))
        span = (l_out - 1) * stride + 1
        taps = [x_p[:, :, kk * dilation: kk * dilation + span: stride]
                for kk in range(k)]
        x_eff, left = jnp.concatenate(taps, axis=1), 0     # (B, K*C_in, L_out)
    right = needed_len - left - x_eff.shape[2]
    assert right >= 0
    x_in = jnp.pad(x_eff, ((0, 0), (0, 0), (left, right))).astype(cdt)

    # Weight layout: tap axis folded into the contraction (never on lanes).
    if split_kdots:
        if stride == 1:
            w_in = jnp.transpose(weight, (2, 0, 1)).astype(cdt)   # (K, C_out, C_in)
        else:
            w_in = jnp.transpose(weight, (0, 2, 1)).reshape(
                c_out, k * c_in)[None].astype(cdt)                # (1, C_out, K*C_in)
        w_spec = pl.BlockSpec((k_eff, tile_co, c_in_eff),
                              lambda bb, co, jj: (0, co, 0))
    else:
        w_in = jnp.transpose(weight, (0, 2, 1)).reshape(c_out, k * c_in).astype(cdt)
        w_spec = pl.BlockSpec((tile_co, k_eff * c_in_eff),
                              lambda bb, co, jj: (co, 0))
    b_in = bias.reshape(c_out, 1).astype(jnp.float32)             # bias stays f32

    kernel = functools.partial(_conv1d_kernel, k_taps=k_eff, dilation=dil_eff,
                               tile_l=tile_l, c_in=c_in_eff,
                               split_kdots=split_kdots)

    vmem_limit = int(max(32 * 1024 * 1024,
                         min(footprint(tile_l) + 16 * 1024 * 1024,
                             int(vmem_cap * 0.9))))

    return pl.pallas_call(
        kernel,
        out_shape=jax.ShapeDtypeStruct((b, c_out, l_out), out_dtype),
        grid_spec=pltpu.PrefetchScalarGridSpec(
            num_scalar_prefetch=0,
            grid=(b, n_co, nj),
            in_specs=[
                pl.BlockSpec(memory_space=pl.ANY),          # x stays in HBM
                w_spec,
                pl.BlockSpec((tile_co, 1), lambda bb, co, jj: (co, 0)),
            ],
            out_specs=pl.BlockSpec((None, tile_co, tile_l),
                                   lambda bb, co, jj: (bb, co, jj)),
            scratch_shapes=[
                pltpu.VMEM((2, c_in_eff, win), cdt),
                pltpu.SemaphoreType.DMA((2,)),
            ],
        ),
        compiler_params=pltpu.CompilerParams(
            dimension_semantics=("parallel", "parallel", "arbitrary"),
            vmem_limit_bytes=vmem_limit,
        ),
    )(x_in, w_in, b_in)


def init_conv_norm_params(key, in_channels, out_channels, kernel_size):
    """Deterministic init matching ConvNorm.__init__ (kaiming_normal_ weight,
    default Conv1d uniform bias)."""
    kw, kb = jax.random.split(key)
    fan_in = in_channels * kernel_size
    std = math.sqrt(2.0) / math.sqrt(fan_in)          # kaiming_normal_, gain=sqrt(2)
    weight = std * jax.random.normal(
        kw, (out_channels, in_channels, kernel_size), dtype=jnp.float32)
    bound = 1.0 / math.sqrt(fan_in)
    bias = jax.random.uniform(
        kb, (out_channels,), minval=-bound, maxval=bound, dtype=jnp.float32)
    return weight, bias


def _reference_conv(x, weight, bias, stride, padding, dilation):
    c_out = weight.shape[0]
    out = jax.lax.conv_general_dilated(
        x, weight, window_strides=(stride,), padding=[(padding, padding)],
        rhs_dilation=(dilation,), dimension_numbers=("NCH", "OIH", "NCH"),
        precision=jax.lax.Precision.HIGHEST)
    return out + bias.reshape(1, c_out, 1)


if __name__ == "__main__":
    key = jax.random.PRNGKey(0)
    k_x, k_p = jax.random.split(key)

    cases = [
        # (B, C_in, C_out, L,   K, stride, dilation, max_tile_l)
        (2, 4,   8,   16,  3, 1, 1, 2048),   # ConvNorm(4, 8, kernel_size=3)
        (2, 4,   8,   16,  1, 1, 1, 2048),   # default kernel_size=1
        (2, 4,   8,   16,  3, 1, 2, 2048),   # dilated
        (2, 4,   8,   16,  3, 2, 1, 2048),   # strided
        (2, 4,   8,   300, 3, 1, 1, 128),    # nj=3: halo DMA chain + masked edge store
        (1, 128, 128, 256, 3, 1, 1, 128),    # C_in>=128: K accumulating-dot path
    ]

    for i, (B, CI, CO, L, ks, st, dil, mtl) in enumerate(cases):
        x = jax.random.normal(jax.random.fold_in(k_x, i), (B, CI, L),
                              dtype=jnp.float32)
        weight, bias = init_conv_norm_params(jax.random.fold_in(k_p, i), CI, CO, ks)
        padding = int(dil * (ks - 1) / 2)
        out = conv_norm_forward(x, weight, bias, stride=st, padding=None,
                                dilation=dil, max_tile_l=mtl)
        out = jax.block_until_ready(out)
        ref = _reference_conv(x, weight, bias, st, padding, dil)
        assert out.shape == ref.shape, (out.shape, ref.shape)
        err = float(jnp.max(jnp.abs(out - ref)))
        assert jnp.allclose(out, ref, atol=1e-3, rtol=1e-3), (
            f"mismatch in case {i}: max abs err {err}")

    print("KERNEL_OK")
</pallas_src>

<mosaic_0001>
module attributes {stable_mosaic.version = 11 : i64} {
  func.func @_conv1d_kernel(%arg0: i32, %arg1: i32, %arg2: i32, %arg3: memref<2x4x256xf32, #tpu.memory_space<any>>, %arg4: memref<8x12xf32, #tpu.memory_space<vmem>>, %arg5: memref<8x1xf32, #tpu.memory_space<vmem>>, %arg6: memref<1x8x128xf32, #tpu.memory_space<vmem>>, %arg7: memref<2x4x256xf32, #tpu.memory_space<vmem>>, %arg8: memref<2x!tpu.dma_semaphore, #tpu.memory_space<semaphore_mem>>) attributes {dimension_semantics = [#tpu.dimension_semantics<parallel>, #tpu.dimension_semantics<parallel>, #tpu.dimension_semantics<arbitrary>], iteration_bounds = array<i64: 2, 1, 1>, scalar_prefetch = 0 : i64, scratch_operands = 2 : i64, tpu.core_type = #tpu.core_type<tc>, window_params = [{}, {transform_indices = @transform_1, window_bounds = array<i64: 8, 12>}, {transform_indices = @transform_2, window_bounds = array<i64: 8, 1>}, {transform_indices = @transform_3, window_bounds = array<i64: 1, 8, 128>}]} {
    %c2_i32 = arith.constant 2 : i32
    %c0_i32 = arith.constant 0 : i32
    %0 = arith.cmpi eq, %c2_i32, %c0_i32 : i32
    %c1_i32 = arith.constant 1 : i32
    %1 = arith.select %0, %c1_i32, %c2_i32 : i32
    %2 = arith.remsi %arg2, %1 : i32
    %c0_i32_0 = arith.constant 0 : i32
    %3 = arith.cmpi ne, %2, %c0_i32_0 : i32
    %c0_i32_1 = arith.constant 0 : i32
    %4 = arith.cmpi slt, %2, %c0_i32_1 : i32
    %c0_i32_2 = arith.constant 0 : i32
    %5 = arith.cmpi slt, %1, %c0_i32_2 : i32
    %6 = arith.xori %4, %5 : i1
    %7 = arith.andi %6, %3 : i1
    %8 = arith.addi %2, %1 : i32
    %9 = arith.select %7, %8, %2 : i32
    %c0_i32_3 = arith.constant 0 : i32
    %10 = arith.cmpi eq, %arg2, %c0_i32_3 : i32
    %11 = arith.extui %10 : i1 to i32
    %c0_i32_4 = arith.constant 0 : i32
    %12 = arith.cmpi ne, %11, %c0_i32_4 : i32
    scf.if %12 {
      %c128_i32_21 = arith.constant 128 : i32
      %43 = arith.muli %arg2, %c128_i32_21 : i32
      %44 = tpu.assume_multiple %43, 128 : i32
      %c0_i32_22 = arith.constant 0 : i32
      %45 = tpu.memref_slice %arg3[%arg0, %c0_i32_22, %44] : memref<2x4x256xf32, #tpu.memory_space<any>> -> memref<1x4x256xf32, #tpu.memory_space<any>>
      %46 = tpu.memref_squeeze %45 : memref<1x4x256xf32, #tpu.memory_space<any>> -> memref<4x256xf32, #tpu.memory_space<any>>
      %c0_i32_23 = arith.constant 0 : i32
      %c0_i32_24 = arith.constant 0 : i32
      %47 = tpu.memref_slice %arg7[%9, %c0_i32_23, %c0_i32_24] : memref<2x4x256xf32, #tpu.memory_space<vmem>> -> memref<1x4x256xf32, #tpu.memory_space<vmem>>
      %48 = tpu.memref_squeeze %47 : memref<1x4x256xf32, #tpu.memory_space<vmem>> -> memref<4x256xf32, #tpu.memory_space<vmem>>
      %49 = tpu.memref_slice %arg8[%9] : memref<2x!tpu.dma_semaphore, #tpu.memory_space<semaphore_mem>> -> memref<1x!tpu.dma_semaphore, #tpu.memory_space<semaphore_mem>>
      %50 = tpu.memref_squeeze %49 : memref<1x!tpu.dma_semaphore, #tpu.memory_space<semaphore_mem>> -> memref<!tpu.dma_semaphore, #tpu.memory_space<semaphore_mem>>
      tpu.enqueue_dma source(%46 : memref<4x256xf32, #tpu.memory_space<any>>) target(%48 : memref<4x256xf32, #tpu.memory_space<vmem>>) target_semaphore(%50 : memref<!tpu.dma_semaphore, #tpu.memory_space<semaphore_mem>>)
    } else {
    }
    %c128_i32 = arith.constant 128 : i32
    %13 = arith.muli %arg2, %c128_i32 : i32
    %14 = tpu.assume_multiple %13, 128 : i32
    %c0_i32_5 = arith.constant 0 : i32
    %15 = tpu.memref_slice %arg3[%arg0, %c0_i32_5, %14] : memref<2x4x256xf32, #tpu.memory_space<any>> -> memref<1x4x256xf32, #tpu.memory_space<any>>
    %16 = tpu.memref_squeeze %15 : memref<1x4x256xf32, #tpu.memory_space<any>> -> memref<4x256xf32, #tpu.memory_space<any>>
    %c0_i32_6 = arith.constant 0 : i32
    %c0_i32_7 = arith.constant 0 : i32
    %17 = tpu.memref_slice %arg7[%9, %c0_i32_6, %c0_i32_7] : memref<2x4x256xf32, #tpu.memory_space<vmem>> -> memref<1x4x256xf32, #tpu.memory_space<vmem>>
    %18 = tpu.memref_squeeze %17 : memref<1x4x256xf32, #tpu.memory_space<vmem>> -> memref<4x256xf32, #tpu.memory_space<vmem>>
    %19 = tpu.memref_slice %arg8[%9] : memref<2x!tpu.dma_semaphore, #tpu.memory_space<semaphore_mem>> -> memref<1x!tpu.dma_semaphore, #tpu.memory_space<semaphore_mem>>
    %20 = tpu.memref_squeeze %19 : memref<1x!tpu.dma_semaphore, #tpu.memory_space<semaphore_mem>> -> memref<!tpu.dma_semaphore, #tpu.memory_space<semaphore_mem>>
    tpu.wait_dma2 semaphore(%20 : memref<!tpu.dma_semaphore, #tpu.memory_space<semaphore_mem>>) src(%16 : memref<4x256xf32, #tpu.memory_space<any>>) dst(%18 : memref<4x256xf32, #tpu.memory_space<vmem>>)
    %c1_i32_8 = arith.constant 1 : i32
    %21 = arith.addi %arg2, %c1_i32_8 : i32
    %c1_i32_9 = arith.constant 1 : i32
    %22 = arith.cmpi slt, %21, %c1_i32_9 : i32
    %23 = arith.extui %22 : i1 to i32
    %c0_i32_10 = arith.constant 0 : i32
    %24 = arith.cmpi ne, %23, %c0_i32_10 : i32
    scf.if %24 {
      %c1_i32_21 = arith.constant 1 : i32
      %43 = arith.addi %arg2, %c1_i32_21 : i32
      %c1_i32_22 = arith.constant 1 : i32
      %44 = arith.subi %c1_i32_22, %9 : i32
      %c128_i32_23 = arith.constant 128 : i32
      %45 = arith.muli %43, %c128_i32_23 : i32
      %46 = tpu.assume_multiple %45, 128 : i32
      %c0_i32_24 = arith.constant 0 : i32
      %47 = tpu.memref_slice %arg3[%arg0, %c0_i32_24, %46] : memref<2x4x256xf32, #tpu.memory_space<any>> -> memref<1x4x256xf32, #tpu.memory_space<any>>
      %48 = tpu.memref_squeeze %47 : memref<1x4x256xf32, #tpu.memory_space<any>> -> memref<4x256xf32, #tpu.memory_space<any>>
      %c0_i32_25 = arith.constant 0 : i32
      %c0_i32_26 = arith.constant 0 : i32
      %49 = tpu.memref_slice %arg7[%44, %c0_i32_25, %c0_i32_26] : memref<2x4x256xf32, #tpu.memory_space<vmem>> -> memref<1x4x256xf32, #tpu.memory_space<vmem>>
      %50 = tpu.memref_squeeze %49 : memref<1x4x256xf32, #tpu.memory_space<vmem>> -> memref<4x256xf32, #tpu.memory_space<vmem>>
      %51 = tpu.memref_slice %arg8[%44] : memref<2x!tpu.dma_semaphore, #tpu.memory_space<semaphore_mem>> -> memref<1x!tpu.dma_semaphore, #tpu.memory_space<semaphore_mem>>
      %52 = tpu.memref_squeeze %51 : memref<1x!tpu.dma_semaphore, #tpu.memory_space<semaphore_mem>> -> memref<!tpu.dma_semaphore, #tpu.memory_space<semaphore_mem>>
      tpu.enqueue_dma source(%48 : memref<4x256xf32, #tpu.memory_space<any>>) target(%50 : memref<4x256xf32, #tpu.memory_space<vmem>>) target_semaphore(%52 : memref<!tpu.dma_semaphore, #tpu.memory_space<semaphore_mem>>)
    } else {
    }
    %25 = arith.index_cast %9 : i32 to index
    %c0 = arith.constant 0 : index
    %c0_11 = arith.constant 0 : index
    %26 = vector.load %arg7[%25, %c0, %c0_11] : memref<2x4x256xf32, #tpu.memory_space<vmem>>, vector<1x4x128xf32>
    %27 = vector.shape_cast %26 : vector<1x4x128xf32> to vector<4x128xf32>
    %28 = arith.index_cast %9 : i32 to index
    %c0_12 = arith.constant 0 : index
    %c1 = arith.constant 1 : index
    %29 = vector.load %arg7[%28, %c0_12, %c1] : memref<2x4x256xf32, #tpu.memory_space<vmem>>, vector<1x4x128xf32>
    %30 = vector.shape_cast %29 : vector<1x4x128xf32> to vector<4x128xf32>
    %31 = arith.index_cast %9 : i32 to index
    %c0_13 = arith.constant 0 : index
    %c2 = arith.constant 2 : index
    %32 = vector.load %arg7[%31, %c0_13, %c2] : memref<2x4x256xf32, #tpu.memory_space<vmem>>, vector<1x4x128xf32>
    %33 = vector.shape_cast %32 : vector<1x4x128xf32> to vector<4x128xf32>
    %34 = tpu.concatenate %27, %30, %33 in 0 : vector<4x128xf32>, vector<4x128xf32>, vector<4x128xf32> -> vector<12x128xf32>
    %c0_14 = arith.constant 0 : index
    %c0_15 = arith.constant 0 : index
    %35 = vector.load %arg4[%c0_14, %c0_15] : memref<8x12xf32, #tpu.memory_space<vmem>>, vector<8x12xf32>
    %cst = arith.constant dense<0.000000e+00> : vector<8x128xf32>
    %36 = tpu.matmul %35, %34, %cst {dimension_numbers = #tpu.dot_dimension_numbers<[1], [0], [0], [1], [0, 0, 1, 1], [], []>} : vector<8x12xf32>, vector<12x128xf32>, vector<8x128xf32> -> vector<8x128xf32>
    %c0_16 = arith.constant 0 : index
    %c0_17 = arith.constant 0 : index
    %37 = vector.load %arg5[%c0_16, %c0_17] : memref<8x1xf32, #tpu.memory_space<vmem>>, vector<8x1xf32>
    %38 = vector.broadcast %37 : vector<8x1xf32> to vector<8x128xf32>
    %39 = arith.addf %36, %38 : vector<8x128xf32>
    %c0_18 = arith.constant 0 : index
    %c0_19 = arith.constant 0 : index
    %c0_20 = arith.constant 0 : index
    %40 = vector.load %arg6[%c0_18, %c0_19, %c0_20] : memref<1x8x128xf32, #tpu.memory_space<vmem>>, vector<1x8x128xf32>
    %41 = vector.shape_cast %40 : vector<1x8x128xf32> to vector<8x128xf32>
    %42 = vector.shape_cast %39 : vector<8x128xf32> to vector<1x8x128xf32>
    tpu.vector_store %arg6[%c0_18, %c0_19, %c0_20], %42 {strides = array<i32>} : memref<1x8x128xf32, #tpu.memory_space<vmem>>, vector<1x8x128xf32>,
    return
  }
  func.func @transform_1(%arg0: i32, %arg1: i32, %arg2: i32) -> (i32, i32) {
    %c0_i32 = arith.constant 0 : i32
    %c0_i32_0 = arith.constant 0 : i32
    return %arg1, %c0_i32 : i32, i32
  }
  func.func @transform_2(%arg0: i32, %arg1: i32, %arg2: i32) -> (i32, i32) {
    %c0_i32 = arith.constant 0 : i32
    %c0_i32_0 = arith.constant 0 : i32
    return %arg1, %c0_i32 : i32, i32
  }
  func.func @transform_3(%arg0: i32, %arg1: i32, %arg2: i32) -> (i32, i32, i32) {
    %c0_i32 = arith.constant 0 : i32
    return %arg0, %arg1, %arg2 : i32, i32, i32
  }
}

</mosaic_0001>

<llo_original>
// kernel: tpu_custom_call.1
$region0: #{tpu_custom_call.1}
  #allocation0 [shape = 'u32[]', space=smem, size = 0x4, offset = 0x4, fixed_abs, tag = 'smem constant byte address 0x4 - core index']
  #allocation1 [shape = 'u32[72,128]{1,0:T(1,128)}', space=vmem, size = 0x9000, scoped, tag = 'internal scratch']
  #allocation2 [shape = 'f32[2,4,256]{2,1,0:T(4,128)}', space=vmem, size = 0x2000, scoped, tag = 'scratch operand']
  #allocation3 [shape = 's32[2]{0}', space=sflag, size = 0x8, scoped, tag = 'scratch operand']
  #allocation6 [shape = 's32[]', space=sflag, size = 0x4, offset = 0, fixed_abs, tag = 'sflag constant byte address 0x0 - dummy sync flag']
  #allocation7 [shape = 's32[]', space=sflag, size = 0x4, offset = 0, fixed_abs, tag = 'sflag constant byte address 0x0 - dummy sync flag']
  #allocation8 [shape = 'u32[]', space=smem, size = 0x4, offset = 0x44, fixed_abs, tag = 'smem constant byte address 0x44 - assertion arg 0']
  #allocation9 [shape = 'u32[]', space=smem, size = 0x4, offset = 0x48, fixed_abs, tag = 'smem constant byte address 0x48 - assertion arg 1']
  #allocation10 [shape = 's32[]', space=sflag, size = 0x4, offset = 0, fixed_abs, tag = 'sflag constant byte address 0x0 - dummy sync flag']
  #allocation11 [shape = 's32[]', space=sflag, size = 0x4, offset = 0, fixed_abs, tag = 'sflag constant byte address 0x0 - dummy sync flag']
  %s0 = inlined_call_operand.hbm [shape: f32[2,4,256], index: 0, kind: input, shape index: {}]
  %s1 = inlined_call_operand.vmem [shape: f32[8,12], index: 1, kind: input, shape index: {}]
  %s2 = inlined_call_operand.vmem [shape: f32[8,1], index: 2, kind: input, shape index: {}]
  %s3 = inlined_call_operand.hbm [shape: f32[2,8,16], index: 3, kind: output, shape index: {}]
  %s4 = sld [smem:[#allocation0]]
  $region57: #{tpu_custom_call.1} parent=0
    _
  %s6 = ssub.s32 1, %s4
  %s7 = scalar_select 0, %s6, %s4
  $region1: #{tpu_custom_call.1} parent=0
    #allocation4 [shape = 'u8[8192]{0}', space=vmem, size = 0x2000, scoped, tag = 'output window, operand 0']
    #allocation5 [shape = 's32[2]{0}', space=sflag, size = 0x8, scoped, tag = 'scoped memory for tpu_custom_call.1']
    %8 = vsyncpa [#allocation5], 0
    %s9 = scalar_lea.sflag [#allocation5], 1
    %10 = vsyncpa %s9, 0
    loop: start=0, step=1, limit=4
    $region2: #{tpu_custom_call.1} parent=1 // loop_pre_header
      _
    $region3: #{tpu_custom_call.1} parent=1 // loop_header
      %s12 = sphi 0, %s16
      %p13 = scmp.ge.s32.totalorder %s12, 4
      %s19 = sphi 0, %s38
      %s20 = sphi 0, %s34
      %s21 = sphi 0, %s30
      %s22 = sphi 0, %s19
      %s23 = sphi 0, %s20
      %s24 = sphi 0, %s21
      %s25 = sphi 0, %s22
      %s26 = sphi 0, %s23
      %s27 = sphi 0, %s24
      %s41 = sphi 0, %s43
      %s44 = sphi 0, %s41
      %s45 = sphi 0, %s44
      %s61 = sphi 0, %s45
      %s67 = sphi 0, %s69
      %s70 = sphi 0, %s67
      %s71 = sphi 0, %s70
      %s87 = sphi 0, %s71
      %s97 = sphi 0, %s99
      %s100 = sphi 0, %s97
      %s101 = sphi 0, %s100
      %s117 = sphi 0, %s101
    $region4: #{tpu_custom_call.1} parent=1 // loop_header_branch
      %15 = sbr.rel (%p13) target = $region8
    $region5: #{tpu_custom_call.1} parent=1 // loop_body
      %s17 = ssub.s32 %s12, 1
      %s18 = ssub.s32 %s12, 2
      %s28 = sadd.s32 1, %s21
      %p29 = scmp.ge.s32.totalorder %s28, 1
      %s30 = scalar_select %p29, 0, %s28
      %s31 = sadd.s32 1, %s20
      %s32 = scalar_select %p29, %s31, %s20
      %p33 = scmp.ge.s32.totalorder %s32, 1
      %s34 = scalar_select %p33, 0, %s32
      %s35 = sadd.s32 1, %s19
      %s36 = scalar_select %p33, %s35, %s19
      %p37 = scmp.ge.s32.totalorder %s36, 2
      %s38 = scalar_select %p37, 0, %s36
      %s39 = ssub.s32 %s20, %s34
      %p40 = scmp.eq.s32.totalorder %s39, 0
      %s42 = sadd.s32 %s41, 1
      %s43 = scalar_select %p40, %s41, %s42
      %p46 = pneg %p40
      %p47 = scmp.eq.s32.totalorder %s12, 1
      %p48 = por %p46, %p47
      %p49 = scmp.ne.s32.totalorder %s41, %s44
      %p50 = scmp.eq.s32.totalorder %s12, 0
      %p51 = por %p49, %p50
      %p52 = scmp.ne.s32.totalorder %s41, %s44
      %p53 = scmp.eq.s32.totalorder %s17, 1
      %p54 = por %p52, %p53
      %p55 = scmp.ne.s32.totalorder %s44, %s45
      %p56 = scmp.eq.s32.totalorder %s17, 0
      %p57 = por %p55, %p56
      %p58 = scmp.ne.s32.totalorder %s44, %s45
      %p59 = scmp.eq.s32.totalorder %s18, 1
      %p60 = por %p58, %p59
      %p62 = scmp.ne.s32.totalorder %s45, %s61
      %p63 = scmp.eq.s32.totalorder %s18, 0
      %p64 = por %p62, %p63
      %s65 = ssub.s32 %s20, %s34
      %p66 = scmp.eq.s32.totalorder %s65, 0
      %s68 = sadd.s32 %s67, 1
      %s69 = scalar_select %p66, %s67, %s68
      %p72 = pneg %p66
      %p73 = scmp.eq.s32.totalorder %s12, 1
      %p74 = por %p72, %p73
      %p75 = scmp.ne.s32.totalorder %s67, %s70
      %p76 = scmp.eq.s32.totalorder %s12, 0
      %p77 = por %p75, %p76
      %p78 = scmp.ne.s32.totalorder %s67, %s70
      %p79 = scmp.eq.s32.totalorder %s17, 1
      %p80 = por %p78, %p79
      %p81 = scmp.ne.s32.totalorder %s70, %s71
      %p82 = scmp.eq.s32.totalorder %s17, 0
      %p83 = por %p81, %p82
      %p84 = scmp.ne.s32.totalorder %s70, %s71
      %p85 = scmp.eq.s32.totalorder %s18, 1
      %p86 = por %p84, %p85
      %p88 = scmp.ne.s32.totalorder %s71, %s87
      %p89 = scmp.eq.s32.totalorder %s18, 0
      %p90 = por %p88, %p89
      %s91 = ssub.s32 %s19, %s38
      %s92 = ssub.s32 %s20, %s34
      %s93 = sor.u32 %s91, %s92
      %s94 = ssub.s32 %s21, %s30
      %s95 = sor.u32 %s93, %s94
      %p96 = scmp.eq.s32.totalorder %s95, 0
      %s98 = sadd.s32 %s97, 1
      %s99 = scalar_select %p96, %s97, %s98
      %p102 = pneg %p96
      %p103 = scmp.eq.s32.totalorder %s12, 1
      %p104 = por %p102, %p103
      %p105 = scmp.ne.s32.totalorder %s97, %s100
      %p106 = scmp.eq.s32.totalorder %s12, 0
      %p107 = por %p105, %p106
      %p108 = scmp.ne.s32.totalorder %s97, %s100
      %p109 = scmp.eq.s32.totalorder %s17, 1
      %p110 = por %p108, %p109
      %p111 = scmp.ne.s32.totalorder %s100, %s101
      %p112 = scmp.eq.s32.totalorder %s17, 0
      %p113 = por %p111, %p112
      %p114 = scmp.ne.s32.totalorder %s100, %s101
      %p115 = scmp.eq.s32.totalorder %s18, 1
      %p116 = por %p114, %p115
      %p118 = scmp.ne.s32.totalorder %s101, %s117
      %p119 = scmp.eq.s32.totalorder %s18, 0
      %p120 = por %p118, %p119
      %p121 = scmp.le.s32.totalorder 1, %s12
      %p122 = scmp.lt.s32.totalorder %s12, 3
      %p123 = pnand %p121, %p122
      %p124 = pneg %p123
      // Predicated region
      $region9: #{tpu_custom_call.1} parent=5 // pred_check
        _
      $region10: #{tpu_custom_call.1} parent=5 // pred_check_branch
        %126 = sbr.rel (%p123) target = $region12
      $region11: #{tpu_custom_call.1} parent=5 // pred_region
        %s127 = ssub.s32 %s12, 1
        // Predicated region
        $region13: #{tpu_custom_call.1} parent=11 // pred_check
          %p128 = pneg %p57
        $region14: #{tpu_custom_call.1} parent=11 // pred_check_branch
          %130 = sbr.rel (%p128) target = $region16
        $region15: #{tpu_custom_call.1} parent=11 // pred_region
          %p131 = scmp.lt.s32.totalorder %s23, 0
          %s132 = scalar_select %p131, %s23, 0
          %s133 = smul.addr %s132, 8
          %s134 = scalar_lea.vmem %s1, %s133
        $region16: #{tpu_custom_call.1} parent=11 // pred_fallthru
          _
        // Predicated region
        $region17: #{tpu_custom_call.1} parent=11 // pred_check
          %p135 = pneg %p83
        $region18: #{tpu_custom_call.1} parent=11 // pred_check_branch
          %137 = sbr.rel (%p135) target = $region20
        $region19: #{tpu_custom_call.1} parent=11 // pred_region
          %p138 = scmp.lt.s32.totalorder %s23, 0
          %s139 = scalar_select %p138, %s23, 0
          %s140 = smul.addr %s139, 8
          %s141 = scalar_lea.vmem %s2, %s140
        $region20: #{tpu_custom_call.1} parent=11 // pred_fallthru
          _
      $region12: #{tpu_custom_call.1} parent=5 // pred_fallthru
        _
      %p142 = scmp.lt.s32.totalorder %s12, 2
      // Predicated region
      $region21: #{tpu_custom_call.1} parent=5 // pred_check
        %p143 = pneg %p142
      $region22: #{tpu_custom_call.1} parent=5 // pred_check_branch
        %145 = sbr.rel (%p143) target = $region24
      $region23: #{tpu_custom_call.1} parent=5 // pred_region
        _
      $region24: #{tpu_custom_call.1} parent=5 // pred_fallthru
        _
      %p146 = scmp.le.s32.totalorder 1, %s12
      %p147 = scmp.lt.s32.totalorder %s12, 3
      %p148 = pnand %p146, %p147
      %p149 = pneg %p148
      // Predicated region
      $region25: #{tpu_custom_call.1} parent=5 // pred_check
        _
      $region26: #{tpu_custom_call.1} parent=5 // pred_check_branch
        %151 = sbr.rel (%p148) target = $region28
      $region27: #{tpu_custom_call.1} parent=5 // pred_region
        %s152 = ssub.s32 %s12, 1
        %p153 = scmp.lt.s32.totalorder %s23, 0
        %s154 = scalar_select %p153, %s23, 0
        %s155 = smul.addr %s154, 8
        %s156 = scalar_lea.vmem %s1, %s155
        %p157 = pneg %p57
        %p158 = pneg %p54
        %p159 = scmp.lt.s32.totalorder %s23, 0
        %s160 = scalar_select %p159, %s23, 0
        %s161 = smul.addr %s160, 8
        %s162 = scalar_lea.vmem %s2, %s161
        %p163 = pneg %p83
        %p164 = pneg %p80
        %p165 = pneg %p113
        %p166 = pneg %p110
        %s167 = sand.u32 %s100, 1
        %s168 = scalar_lea.sflag [#allocation5], %s167
        %s169 = sand.u32 %s100, 1
        %s170 = smul.addr %s169, 8
        %s171 = scalar_lea.vmem [#allocation4], %s170
        %p172 = scmp.lt.s32.totalorder %s23, 0
        %s173 = scalar_select %p172, %s23, 0
        %s174 = smul.addr %s173, 8
        %s175 = scalar_lea.vmem %s1, %s174
        %p176 = scmp.lt.s32.totalorder %s23, 0
        %s177 = scalar_select %p176, %s23, 0
        %s178 = smul.addr %s177, 8
        %s179 = scalar_lea.vmem %s2, %s178
        %p180 = scmp.lt.s32.totalorder %s24, 0
        %s181 = ssub.s32 0, %s24
        %s182 = scalar_select %p180, %s181, %s24
        %s183 = sand.u32 %s182, 1
        %s184 = ssub.s32 0, %s183
        %s185 = scalar_select %p180, %s184, %s183
        %p186 = scmp.ne.s32.totalorder %s185, 0
        %p187 = scmp.lt.s32.totalorder %s185, 0
        %p188 = pnand %p187, %p186
        %p189 = pneg %p188
        %s190 = sadd.s32 %s185, 2
        %s191 = scalar_select %p189, %s190, %s185
        %p192 = scmp.eq.s32.totalorder %s24, 0
        // Predicated region
        $region29: #{tpu_custom_call.1} parent=27 // pred_check
          %p193 = pneg %p192
        $region30: #{tpu_custom_call.1} parent=27 // pred_check_branch
          %195 = sbr.rel (%p193) target = $region32
        $region31: #{tpu_custom_call.1} parent=27 // pred_region
          %s196 = smul.u32 %s24, 128
          %s197 = sshra.s32 %s196, 7
          %s198 = sand.u32 %s196, 127
          %s199 = smul.u32 %s22, 2
          %s200 = sadd.s32 %s197, %s199
          %s201 = smul.addr %s200, 4
          %s202 = scalar_lea.hbm %s0, %s201
          %s203 = smul.u32 %s191, 2
          %s204 = smul.addr %s203, 4
          %s205 = scalar_lea.vmem [#allocation2], %s204
          %s206 = scalar_lea.sflag [#allocation3], %s191
          // Predicated region
          $region33: #{tpu_custom_call.1} parent=31 // pred_check
            _
          $region34: #{tpu_custom_call.1} parent=31 // pred_check_branch
            %208 = sbr.rel target = $region36
          $region35: #{tpu_custom_call.1} parent=31 // pred_region
            %209 = sst [smem:[#allocation8]] [#allocation7]
            %210 = sst [smem:[#allocation9]] [#allocation6]
          $region36: #{tpu_custom_call.1} parent=31 // pred_fallthru
            _
          %212 = shalt.err (0)
          %s214 = sshll.u32 %s202, 4
          %s215 = int_to_ptr.hbm [resolvable:$true] %s214
          %s216 = sshll.u32 %s205, 4
          %s217 = int_to_ptr.vmem [resolvable:$true] %s216
          %219 = dma.hbm_to_vmem [thread:$0]  %s215, 128, %s217, %s206
        $region32: #{tpu_custom_call.1} parent=27 // pred_fallthru
          _
        %s220 = smul.u32 %s24, 128
        %s221 = smul.u32 %s191, 2
        %s222 = smul.addr %s221, 4
        %s223 = scalar_lea.vmem [#allocation2], %s222
        %s224 = scalar_lea.sflag [#allocation3], %s191
        %s225 = smul.u32 4, 1
        %s226 = smul.u32 %s225, 2
        %s227 = sshll.u32 %s226, 4
        %228 = dma.done %s224, %s227
        %s229 = sadd.s32 %s24, 1
        %p230 = scmp.lt.s32.totalorder %s229, 1
        // Predicated region
        $region37: #{tpu_custom_call.1} parent=27 // pred_check
          %p231 = pneg %p230
        $region38: #{tpu_custom_call.1} parent=27 // pred_check_branch
          %233 = sbr.rel (%p231) target = $region40
        $region39: #{tpu_custom_call.1} parent=27 // pred_region
          %s234 = ssub.s32 1, %s191
          %s235 = smul.u32 %s229, 128
          %s236 = sshra.s32 %s235, 7
          %s237 = sand.u32 %s235, 127
          %s238 = smul.u32 %s22, 2
          %s239 = sadd.s32 %s236, %s238
          %s240 = smul.addr %s239, 4
          %s241 = scalar_lea.hbm %s0, %s240
          %s242 = smul.u32 %s234, 2
          %s243 = smul.addr %s242, 4
          %s244 = scalar_lea.vmem [#allocation2], %s243
          %s245 = scalar_lea.sflag [#allocation3], %s234
          // Predicated region
          $region41: #{tpu_custom_call.1} parent=39 // pred_check
            _
          $region42: #{tpu_custom_call.1} parent=39 // pred_check_branch
            %247 = sbr.rel target = $region44
          $region43: #{tpu_custom_call.1} parent=39 // pred_region
            %248 = sst [smem:[#allocation8]] [#allocation11]
            %249 = sst [smem:[#allocation9]] [#allocation10]
          $region44: #{tpu_custom_call.1} parent=39 // pred_fallthru
            _
          %251 = shalt.err (0)
          %s253 = sshll.u32 %s241, 4
          %s254 = int_to_ptr.hbm [resolvable:$true] %s253
          %s255 = sshll.u32 %s244, 4
          %s256 = int_to_ptr.vmem [resolvable:$true] %s255
          %258 = dma.hbm_to_vmem [thread:$0]  %s254, 128, %s256, %s245
        $region40: #{tpu_custom_call.1} parent=27 // pred_fallthru
          _
        %v259 = vld [vmem:[%s223] sm:$0xf]
        %v260 = vld [vmem:[%s223] sm:$0xff]
        %s262 = scalar_lea.vmem [#allocation1], 1
        %263 = vst [vmem:[%s262] ss:$2 sm:$0xff] %v260
        %v264 = vld.sshfl [vmem:[#allocation1] sm:$0xff pattern:$0x75316420]
        %v265 = vld.sshfl [vmem:[#allocation1 + $0x8] sm:$0xff pattern:$0x75316420]
        %266 = vrot.lane.b32.xlu0 %v264, 127
        %v267 = vpop.permute.xlu0 %266
        %268 = vrot.lane.b32.xlu0 %v265, 127
        %v269 = vpop.permute.xlu0 %268
        %vm270 = vcmask 1039360
        %v271 = vsel %vm270, %v267, %v269
        %273 = vst [vmem:[#allocation1] ss:$2 sm:$0xff] %v260
        %v274 = vld.sshfl [vmem:[#allocation1] sm:$0xff pattern:$0x75316420]
        %v275 = vld.sshfl [vmem:[#allocation1 + $0x8] sm:$0xff pattern:$0x75316420]
        %276 = vrot.lane.b32.xlu0 %v274, 126
        %v277 = vpop.permute.xlu0 %276
        %278 = vrot.lane.b32.xlu0 %v275, 126
        %v279 = vpop.permute.xlu0 %278
        %vm280 = vcmask 1031168
        %v281 = vsel %vm280, %v277, %v279
        %vm282 = vcmask 1043456
        %v283 = vsel %vm282, %v259, %v271
        %v284 = vld [vmem:[%s175] sm:$0xff]
        %v285 = vld [vmem:[%s179] sm:$0xff]
        %287 = vset.pattern.permute.xlu0 0
        %288 = vperm.xlu0 %287, %v285
        %v289 = vpop.permute.xlu0 %288
        %vm291 = vcmask 97280
        %v293 = vsel %vm291, %v284, 0
        %v295 = vsel %vm282, %v281, 0
        %297 = vmatpush.msra.mxu0 0.0
        %298 = vmatpush.msra.mxu0 0.0
        %299 = vmatpush.msra.mxu0 0.0
        %300 = vmatpush.msra.mxu0 0.0
        %301 = vmatpush.msra.mxu0 0.0
        %302 = vmatpush.msra.mxu0 0.0
        %303 = vmatpush.msra.mxu0 0.0
        %304 = vmatpush.msra.mxu0 0.0
        %305 = vmatpush.msra.mxu0 0.0
        %306 = vmatpush.msra.mxu0 0.0
        %307 = vmatpush.msra.mxu0 0.0
        %308 = vmatpush.msra.mxu0 0.0
        %309 = vmatpush.msra.mxu0 0.0
        %310 = vmatpush.msra.mxu0 0.0
        %311 = vmatpush.msra.mxu0 %v295
        %312 = vmatpush.msra.mxu0 %v283
        %313 = vmatmul.f32.gmra.mxu0 %v293
        %v314 = vpop.f32.mrf.mxu0
        %v315 = vadd.f32 %v289, %v314
        %316 = vdwg.mxu0
        %317 = vst [vmem:[%s171] sm:$0xff] %v315
        %s318 = sand.u32 %s100, 1
        %s319 = scalar_lea.sflag [#allocation5], %s318
        %s320 = sand.u32 %s100, 1
        %s321 = smul.addr %s320, 8
        %s322 = scalar_lea.vmem [#allocation4], %s321
        // Predicated region
        $region45: #{tpu_custom_call.1} parent=27 // pred_check
          %p323 = pneg %p110
        $region46: #{tpu_custom_call.1} parent=27 // pred_check_branch
          %325 = sbr.rel (%p323) target = $region48
        $region47: #{tpu_custom_call.1} parent=27 // pred_region
          %327 = vsyncadd %s319, 0
          %s328 = sadd.s32 %s24, %s23
          %s329 = sadd.s32 %s328, %s22
          %s330 = smul.addr %s329, 8
          %s331 = scalar_lea.hbm %s3, %s330
          %s333 = sshll.u32 %s322, 4
          %s334 = int_to_ptr.vmem [resolvable:$true] %s333
          %s335 = sshll.u32 %s331, 4
          %s336 = int_to_ptr.hbm [resolvable:$true] %s335
          %338 = dma.vmem_to_hbm [thread:$0]  %s334, 128, %s336, %s319
        $region48: #{tpu_custom_call.1} parent=27 // pred_fallthru
          _
      $region28: #{tpu_custom_call.1} parent=5 // pred_fallthru
        _
      %p339 = scmp.le.s32.totalorder 2, %s12
      // Predicated region
      $region49: #{tpu_custom_call.1} parent=5 // pred_check
        %p340 = pneg %p339
      $region50: #{tpu_custom_call.1} parent=5 // pred_check_branch
        %342 = sbr.rel (%p340) target = $region52
      $region51: #{tpu_custom_call.1} parent=5 // pred_region
        %s343 = ssub.s32 %s12, 2
        // Predicated region
        $region53: #{tpu_custom_call.1} parent=51 // pred_check
          %p344 = pneg %p116
        $region54: #{tpu_custom_call.1} parent=51 // pred_check_branch
          %346 = sbr.rel (%p344) target = $region56
        $region55: #{tpu_custom_call.1} parent=51 // pred_region
          %s347 = sand.u32 %s101, 1
          %s348 = scalar_lea.sflag [#allocation5], %s347
          %s349 = sand.u32 %s101, 1
          %s350 = smul.addr %s349, 8
          %s351 = scalar_lea.vmem [#allocation4], %s350
          %353 = dma.done %s348, 128
        $region56: #{tpu_custom_call.1} parent=51 // pred_fallthru
          _
      $region52: #{tpu_custom_call.1} parent=5 // pred_fallthru
        _
    $region6: #{tpu_custom_call.1} parent=1 // loop_footer
      %s16 = sadd.s32 1, %s12
    $region7: #{tpu_custom_call.1} parent=1 // loop_footer_branch
      %11 = sbr.rel target = $region3
    $region8: #{tpu_custom_call.1} parent=1 // loop_exit
      _
    %354 = vsyncpa [#allocation5], 1
    %s355 = scalar_lea.sflag [#allocation5], 1
    %356 = vsyncpa %s355, 1
  %357 = vsyncmov [#allocation3]
  %s358 = vpop.sfrf %357
  %p359 = scmp.eq.s32.totalorder %s358, 0
  %p360 = pneg %p359
  %362 = shalt.err (%p360)
  %s363 = scalar_lea.sflag [#allocation3], 1
  %364 = vsyncmov %s363
  %s365 = vpop.sfrf %364
  %p366 = scmp.eq.s32.totalorder %s365, 0
  %p367 = pneg %p366
  %369 = shalt.err (%p367)

</llo_original>
